<compile_context>
chip_gen: v5e
topology: v5e:2x2
jax: 0.10.0
libtpu: 0.0.40
codegen_flags: <defaults>
</compile_context>

<pallas_src>
import functools

import jax
import jax.numpy as jnp
from jax import lax
from jax.experimental import pallas as pl
from jax.experimental.pallas import tpu as pltpu


def _cdiv(a, b):
    return -(-a // b)


def _round_up(a, m):
    return _cdiv(a, m) * m


def _iou_partials_kernel(x_ref, t_ref, out_ref, *, n_classes, hw, tg,
                         tiles_per_split, apply_softmax, needs_mask):
    """Accumulate per-class (intersect, y_sum, z_sum) partial sums.

    x_ref:   (1, C, TG, 128) logits (f32 or bf16)
    t_ref:   (1, TG, 128)    int32 class indices (padded columns hold n_classes)
    out_ref: (1, 1, 3*C, 8, 128) f32 running partial sums for this (batch, split)
             layout along dim 2: index = quantity * C + class,
             quantity 0 = intersect, 1 = y_sum, 2 = z_sum.
    """
    s_idx = pl.program_id(1)      # pixel-axis split (v7x megacore helper)
    j = pl.program_id(2)          # pixel tile within the split (reduction axis)

    @pl.when(j == 0)
    def _():
        out_ref[...] = jnp.zeros_like(out_ref)

    x = x_ref[0].astype(jnp.float32)      # (C, TG, 128); bf16 -> f32 upcast here
    t = t_ref[0]                          # (TG, 128) int32
    lanes = x.shape[-1]

    if apply_softmax:
        # Class axis is a leading dim -> these reductions are elementwise VPU
        # max/add across C full (TG, 128) slabs (no cross-sublane XLU work).
        m = jnp.max(x, axis=0)                        # (TG, 128)
        e = jnp.exp(x - m)                            # (C, TG, 128)  EUP
        s = jnp.sum(e, axis=0)                        # (TG, 128)
        r = pl.reciprocal(s, approx=True)             # EUP slot
        r = r * (2.0 - s * r)                         # one Newton step -> ~f32 exact
        if needs_mask:
            # Fold the padding mask into the per-pixel reciprocal: one select
            # per pixel instead of C selects on the full probability slab.
            base = (s_idx * tiles_per_split + j) * tg
            row = lax.broadcasted_iota(jnp.int32, (tg, lanes), 0)
            lane = lax.broadcasted_iota(jnp.int32, (tg, lanes), 1)
            pix = (base + row) * lanes + lane
            r = jnp.where(pix < hw, r, 0.0)
        p = e * r                                     # (C, TG, 128)
    else:
        # Probabilities passed in directly; padded columns are zero-padded in
        # the glue, so they contribute nothing to z_sum (labels are padded
        # with the out-of-range value n_classes, so one-hot is zero there).
        p = x

    def fold8(a):
        # (TG, 128) -> (8, 128) with pure VPU vreg adds (TG is a multiple of 8).
        return jnp.sum(a.reshape(tg // 8, 8, lanes), axis=0)

    for c in range(n_classes):
        pc = p[c]                                     # (TG, 128)
        hit = t == c                                  # one compare per pixel
        out_ref[0, 0, 0 * n_classes + c] += fold8(jnp.where(hit, pc, 0.0))  # intersect
        out_ref[0, 0, 1 * n_classes + c] += fold8(hit.astype(jnp.float32))  # y_sum
        out_ref[0, 0, 2 * n_classes + c] += fold8(pc * pc)                  # z_sum


def _choose_tiling(hw, n_classes, logit_bytes, *, granule_align,
                   target_granules=256, input_vmem_budget=16 * 1024 * 1024,
                   max_buffers=3):
    """Pick (tile_granules, num_tiles) for the pixel axis.

    One granule = 128 pixels (one lane row).  Targets ~32K pixels per tile
    (256 granules) and keeps the worst-case (triple-buffered) input working
    set under `input_vmem_budget`, leaving headroom for intermediates inside
    the 40 MiB vmem_limit (which itself fits v7x's 64 MiB physical VMEM).
    """
    g = _cdiv(hw, 128)
    g_aligned = _round_up(g, granule_align)
    per_granule = max_buffers * 128 * (n_classes * logit_bytes + 4)  # logits + i32 labels
    cap = max(granule_align,
              (input_vmem_budget // per_granule) // granule_align * granule_align)
    desired = max(granule_align, min(_round_up(target_granules, granule_align), cap))
    num_tiles = _cdiv(g_aligned, desired)
    tg = _round_up(_cdiv(g_aligned, num_tiles), granule_align)
    return tg, num_tiles


def _input_spec(block_shape, index_map, n_buffers):
    """BlockSpec with deeper pipelining when useful (v5e DMA-bubble hiding)."""
    if n_buffers > 2:
        try:
            return pl.BlockSpec(block_shape, index_map,
                                pipeline_mode=pl.Buffered(n_buffers))
        except Exception:  # older jax without pipeline_mode / Buffered
            pass
    return pl.BlockSpec(block_shape, index_map)


def iou_loss(inputs, target, weights=None, softmax=True):
    """IoU loss matching the PyTorch IoULoss.forward semantics.

    inputs: (B, C, H, W) float32/bfloat16 logits (NCHW, like the PyTorch module)
    target: (B, H, W)    integer class indices
    """
    B, C, H, W = inputs.shape
    HW = H * W
    n_classes = C

    if weights is None:
        weights = [1.0] * n_classes
    w = jnp.asarray(weights, dtype=jnp.float32)

    # Keep bf16 logits narrow through the HBM->VMEM DMA (upcast in-kernel);
    # everything else is handled in f32.
    x_dtype = jnp.bfloat16 if inputs.dtype == jnp.bfloat16 else jnp.float32
    logit_bytes = jnp.dtype(x_dtype).itemsize
    granule_align = 16 if logit_bytes == 2 else 8   # keep (sublane,128) tiles clean

    tg, num_tiles = _choose_tiling(HW, C, logit_bytes, granule_align=granule_align)

    # v7x megacore: the batch axis is "parallel"; if it cannot be split across
    # the two TensorCores (B == 1), split the pixel-tile axis 2-way instead.
    n_splits = 2 if (B == 1 and num_tiles >= 2) else 1
    tiles_per_split = _cdiv(num_tiles, n_splits)
    num_tiles = n_splits * tiles_per_split

    g_pad = tg * num_tiles
    n_pix_pad = g_pad * 128

    # Glue: contiguous reshapes only (no HBM transpose); pixels land on both
    # sublanes and lanes.
    x = inputs.reshape(B, C, HW).astype(x_dtype)
    t = target.reshape(B, HW).astype(jnp.int32)
    if n_pix_pad != HW:
        x = jnp.pad(x, ((0, 0), (0, 0), (0, n_pix_pad - HW)))
        t = jnp.pad(t, ((0, 0), (0, n_pix_pad - HW)),
                    constant_values=n_classes)       # out-of-range label
    x = x.reshape(B, C, g_pad, 128)
    t = t.reshape(B, g_pad, 128)

    # With softmax=False the zero-padded probabilities already contribute zero;
    # only the softmax path needs the in-kernel per-pixel mask.
    needs_mask = bool(softmax) and (n_pix_pad != HW)

    kernel = functools.partial(
        _iou_partials_kernel,
        n_classes=n_classes, hw=HW, tg=tg, tiles_per_split=tiles_per_split,
        apply_softmax=bool(softmax), needs_mask=needs_mask)

    n_buf = 3 if tiles_per_split >= 3 else 2
    in_specs = [
        _input_spec((1, C, tg, 128),
                    lambda b, s, j: (b, 0, s * tiles_per_split + j, 0), n_buf),
        _input_spec((1, tg, 128),
                    lambda b, s, j: (b, s * tiles_per_split + j, 0), n_buf),
    ]

    partials = pl.pallas_call(
        kernel,
        out_shape=jax.ShapeDtypeStruct((B, n_splits, 3 * C, 8, 128), jnp.float32),
        grid_spec=pltpu.PrefetchScalarGridSpec(
            num_scalar_prefetch=0,
            grid=(B, n_splits, tiles_per_split),
            in_specs=in_specs,
            out_specs=pl.BlockSpec((1, 1, 3 * C, 8, 128),
                                   lambda b, s, j: (b, s, 0, 0, 0)),
        ),
        compiler_params=pltpu.CompilerParams(
            # batch + pixel-split axes parallel (megacore), pixel-tile axis is
            # the sequential reduction.
            dimension_semantics=("parallel", "parallel", "arbitrary"),
            vmem_limit_bytes=40 * 1024 * 1024,   # <= v7x 64 MiB physical cap
        ),
    )(x, t)

    # Tiny epilogue: reduce the lane-dense partials and combine the weighted IoU.
    sums = jnp.sum(partials, axis=(0, 1, 3, 4)).reshape(3, C)
    intersect, y_sum, z_sum = sums[0], sums[1], sums[2]
    smooth = 1e-05
    iou = (intersect + smooth) / (z_sum + y_sum - intersect + smooth)
    loss = jnp.sum((1.0 - iou) * w) / n_classes
    return loss


def _ref_iou_loss(inputs, target, weights, softmax=True):
    """Pure-JAX reference mirroring the PyTorch module exactly."""
    n_classes = inputs.shape[1]
    p = jax.nn.softmax(inputs, axis=1) if softmax else inputs
    oh = jax.nn.one_hot(target, n_classes, axis=1, dtype=jnp.float32)
    smooth = 1e-05
    loss = 0.0
    for i in range(n_classes):
        s, t = p[:, i], oh[:, i]
        intersect = jnp.sum(s * t)
        y_sum = jnp.sum(t * t)
        z_sum = jnp.sum(s * s)
        l = (intersect + smooth) / (z_sum + y_sum - intersect + smooth)
        loss = loss + (1.0 - l) * weights[i]
    return loss / n_classes


if __name__ == "__main__":
    key = jax.random.PRNGKey(0)
    keys = jax.random.split(key, 8)

    B, C, H, W = 2, 4, 16, 16
    weights = [1.0, 2.0, 0.5, 1.5]   # non-uniform to exercise the weighted combine

    logits = jax.random.normal(keys[0], (B, C, H, W), dtype=jnp.float32)
    target = jax.random.randint(keys[1], (B, H, W), 0, C, dtype=jnp.int32)

    # softmax=True path
    loss = jax.block_until_ready(iou_loss(logits, target, weights=weights, softmax=True))
    ref = _ref_iou_loss(logits, target, weights, softmax=True)
    assert jnp.allclose(loss, ref, atol=1e-5, rtol=1e-5), (loss, ref)

    # softmax=False path (pre-softmaxed probabilities)
    probs = jax.nn.softmax(logits, axis=1)
    loss2 = jax.block_until_ready(iou_loss(probs, target, weights=weights, softmax=False))
    ref2 = _ref_iou_loss(probs, target, weights, softmax=False)
    assert jnp.allclose(loss2, ref2, atol=1e-5, rtol=1e-5), (loss2, ref2)

    # non-128-multiple spatial size exercises the pad + per-pixel-mask path
    H2, W2 = 15, 15
    logits3 = jax.random.normal(keys[2], (B, C, H2, W2), dtype=jnp.float32)
    target3 = jax.random.randint(keys[3], (B, H2, W2), 0, C, dtype=jnp.int32)
    loss3 = jax.block_until_ready(iou_loss(logits3, target3, weights=weights, softmax=True))
    ref3 = _ref_iou_loss(logits3, target3, weights, softmax=True)
    assert jnp.allclose(loss3, ref3, atol=1e-5, rtol=1e-5), (loss3, ref3)

    # B == 1 -> pixel axis split 2-way across the "parallel" split axis (v7x)
    H4, W4 = 192, 192
    logits4 = jax.random.normal(keys[4], (1, C, H4, W4), dtype=jnp.float32)
    target4 = jax.random.randint(keys[5], (1, H4, W4), 0, C, dtype=jnp.int32)
    loss4 = jax.block_until_ready(iou_loss(logits4, target4, weights=weights, softmax=True))
    ref4 = _ref_iou_loss(logits4, target4, weights, softmax=True)
    assert jnp.allclose(loss4, ref4, atol=1e-4, rtol=1e-4), (loss4, ref4)

    # multi-tile sequential accumulation over the pixel axis (+ Buffered(3) path)
    H5, W5 = 320, 320
    logits5 = jax.random.normal(keys[6], (B, C, H5, W5), dtype=jnp.float32)
    target5 = jax.random.randint(keys[7], (B, H5, W5), 0, C, dtype=jnp.int32)
    loss5 = jax.block_until_ready(iou_loss(logits5, target5, weights=weights, softmax=True))
    ref5 = _ref_iou_loss(logits5, target5, weights, softmax=True)
    assert jnp.allclose(loss5, ref5, atol=1e-4, rtol=1e-4), (loss5, ref5)

    # bf16 logits stay bf16 through the DMA and are upcast inside the kernel
    logits6 = logits.astype(jnp.bfloat16)
    loss6 = jax.block_until_ready(iou_loss(logits6, target, weights=weights, softmax=True))
    ref6 = _ref_iou_loss(logits6.astype(jnp.float32), target, weights, softmax=True)
    assert jnp.allclose(loss6, ref6, atol=1e-5, rtol=1e-5), (loss6, ref6)

    print("KERNEL_OK")
</pallas_src>

<mosaic_0001>
module attributes {stable_mosaic.version = 11 : i64} {
  func.func @_iou_partials_kernel(%arg0: i32, %arg1: i32, %arg2: i32, %arg3: memref<1x4x8x128xf32, #tpu.memory_space<vmem>>, %arg4: memref<1x8x128xi32, #tpu.memory_space<vmem>>, %arg5: memref<1x1x12x8x128xf32, #tpu.memory_space<vmem>>) attributes {dimension_semantics = [#tpu.dimension_semantics<parallel>, #tpu.dimension_semantics<parallel>, #tpu.dimension_semantics<arbitrary>], iteration_bounds = array<i64: 2, 1, 1>, scalar_prefetch = 0 : i64, scratch_operands = 0 : i64, tpu.core_type = #tpu.core_type<tc>, window_params = [{transform_indices = @transform_0, window_bounds = array<i64: 1, 4, 8, 128>}, {transform_indices = @transform_1, window_bounds = array<i64: 1, 8, 128>}, {transform_indices = @transform_2, window_bounds = array<i64: 1, 1, 12, 8, 128>}]} {
    %c0_i32 = arith.constant 0 : i32
    %0 = arith.cmpi eq, %arg2, %c0_i32 : i32
    %1 = arith.extui %0 : i1 to i32
    %c0_i32_0 = arith.constant 0 : i32
    %2 = arith.cmpi ne, %1, %c0_i32_0 : i32
    scf.if %2 {
      %cst_137 = arith.constant 0.000000e+00 : f32
      %167 = vector.broadcast %cst_137 : f32 to vector<1x1x12x8x128xf32>
      %c0_138 = arith.constant 0 : index
      %c0_139 = arith.constant 0 : index
      %c0_140 = arith.constant 0 : index
      %c0_141 = arith.constant 0 : index
      %c0_142 = arith.constant 0 : index
      %168 = vector.load %arg5[%c0_138, %c0_139, %c0_140, %c0_141, %c0_142] : memref<1x1x12x8x128xf32, #tpu.memory_space<vmem>>, vector<1x1x12x8x128xf32>
      tpu.vector_store %arg5[%c0_138, %c0_139, %c0_140, %c0_141, %c0_142], %167 {strides = array<i32>} : memref<1x1x12x8x128xf32, #tpu.memory_space<vmem>>, vector<1x1x12x8x128xf32>,
    } else {
    }
    %c0 = arith.constant 0 : index
    %c0_1 = arith.constant 0 : index
    %c0_2 = arith.constant 0 : index
    %c0_3 = arith.constant 0 : index
    %3 = vector.load %arg3[%c0, %c0_1, %c0_2, %c0_3] : memref<1x4x8x128xf32, #tpu.memory_space<vmem>>, vector<1x4x8x128xf32>
    %4 = vector.shape_cast %3 : vector<1x4x8x128xf32> to vector<4x8x128xf32>
    %c0_4 = arith.constant 0 : index
    %c0_5 = arith.constant 0 : index
    %c0_6 = arith.constant 0 : index
    %5 = vector.load %arg4[%c0_4, %c0_5, %c0_6] : memref<1x8x128xi32, #tpu.memory_space<vmem>>, vector<1x8x128xi32>
    %6 = vector.shape_cast %5 : vector<1x8x128xi32> to vector<8x128xi32>
    %cst = arith.constant dense<0xFF800000> : vector<8x128xf32>
    %7 = vector.multi_reduction <maximumf>, %4, %cst [0] : vector<4x8x128xf32> to vector<8x128xf32>
    %8 = vector.shape_cast %7 : vector<8x128xf32> to vector<1x8x128xf32>
    %9 = vector.broadcast %8 : vector<1x8x128xf32> to vector<4x8x128xf32>
    %10 = arith.subf %4, %9 : vector<4x8x128xf32>
    %11 = math.exp %10 : vector<4x8x128xf32>
    %cst_7 = arith.constant dense<0.000000e+00> : vector<8x128xf32>
    %12 = vector.multi_reduction <add>, %11, %cst_7 [0] : vector<4x8x128xf32> to vector<8x128xf32>
    %13 = tpu.reciprocal %12 {approx = true} : vector<8x128xf32> -> vector<8x128xf32>
    %14 = arith.mulf %12, %13 : vector<8x128xf32>
    %cst_8 = arith.constant 2.000000e+00 : f32
    %15 = vector.broadcast %cst_8 : f32 to vector<8x128xf32>
    %16 = arith.subf %15, %14 : vector<8x128xf32>
    %17 = arith.mulf %13, %16 : vector<8x128xf32>
    %c1_i32 = arith.constant 1 : i32
    %18 = arith.muli %arg1, %c1_i32 : i32
    %19 = arith.addi %18, %arg2 : i32
    %c8_i32 = arith.constant 8 : i32
    %20 = arith.muli %19, %c8_i32 : i32
    %21 = tpu.iota {dimensions = array<i32: 0>} : vector<8x128xi32>
    %22 = tpu.iota {dimensions = array<i32: 1>} : vector<8x128xi32>
    %23 = vector.broadcast %20 : i32 to vector<8x128xi32>
    %24 = arith.addi %23, %21 : vector<8x128xi32>
    %c128_i32 = arith.constant 128 : i32
    %25 = vector.broadcast %c128_i32 : i32 to vector<8x128xi32>
    %26 = arith.muli %24, %25 : vector<8x128xi32>
    %27 = arith.addi %26, %22 : vector<8x128xi32>
    %c256_i32 = arith.constant 256 : i32
    %28 = vector.broadcast %c256_i32 : i32 to vector<8x128xi32>
    %29 = arith.cmpi slt, %27, %28 : vector<8x128xi32>
    %cst_9 = arith.constant 0.000000e+00 : f32
    %30 = vector.broadcast %cst_9 : f32 to vector<8x128xf32>
    %31 = arith.select %29, %17, %30 : vector<8x128xi1>, vector<8x128xf32>
    %32 = vector.shape_cast %31 : vector<8x128xf32> to vector<1x8x128xf32>
    %33 = vector.broadcast %32 : vector<1x8x128xf32> to vector<4x8x128xf32>
    %34 = arith.mulf %11, %33 : vector<4x8x128xf32>
    %35 = vector.extract_strided_slice %34 {offsets = [0, 0, 0], sizes = [1, 8, 128], strides = [1, 1, 1]} : vector<4x8x128xf32> to vector<1x8x128xf32>
    %36 = vector.shape_cast %35 : vector<1x8x128xf32> to vector<8x128xf32>
    %c0_i32_10 = arith.constant 0 : i32
    %37 = vector.broadcast %c0_i32_10 : i32 to vector<8x128xi32>
    %38 = arith.cmpi eq, %6, %37 : vector<8x128xi32>
    %c0_11 = arith.constant 0 : index
    %c0_12 = arith.constant 0 : index
    %c0_13 = arith.constant 0 : index
    %c0_14 = arith.constant 0 : index
    %c0_15 = arith.constant 0 : index
    %39 = vector.load %arg5[%c0_11, %c0_12, %c0_13, %c0_14, %c0_15] : memref<1x1x12x8x128xf32, #tpu.memory_space<vmem>>, vector<1x1x1x8x128xf32>
    %40 = vector.shape_cast %39 : vector<1x1x1x8x128xf32> to vector<8x128xf32>
    %cst_16 = arith.constant 0.000000e+00 : f32
    %41 = vector.broadcast %cst_16 : f32 to vector<8x128xf32>
    %42 = arith.select %38, %36, %41 : vector<8x128xi1>, vector<8x128xf32>
    %43 = vector.shape_cast %42 : vector<8x128xf32> to vector<1x8x128xf32>
    %cst_17 = arith.constant dense<0.000000e+00> : vector<8x128xf32>
    %44 = vector.multi_reduction <add>, %43, %cst_17 [0] : vector<1x8x128xf32> to vector<8x128xf32>
    %45 = arith.addf %40, %44 : vector<8x128xf32>
    %c0_18 = arith.constant 0 : index
    %c0_19 = arith.constant 0 : index
    %c0_20 = arith.constant 0 : index
    %c0_21 = arith.constant 0 : index
    %c0_22 = arith.constant 0 : index
    %46 = vector.load %arg5[%c0_18, %c0_19, %c0_20, %c0_21, %c0_22] : memref<1x1x12x8x128xf32, #tpu.memory_space<vmem>>, vector<1x1x1x8x128xf32>
    %47 = vector.shape_cast %46 : vector<1x1x1x8x128xf32> to vector<8x128xf32>
    %48 = vector.shape_cast %45 : vector<8x128xf32> to vector<1x1x1x8x128xf32>
    tpu.vector_store %arg5[%c0_18, %c0_19, %c0_20, %c0_21, %c0_22], %48 {strides = array<i32>} : memref<1x1x12x8x128xf32, #tpu.memory_space<vmem>>, vector<1x1x1x8x128xf32>,
    %c0_23 = arith.constant 0 : index
    %c0_24 = arith.constant 0 : index
    %c4 = arith.constant 4 : index
    %c0_25 = arith.constant 0 : index
    %c0_26 = arith.constant 0 : index
    %49 = vector.load %arg5[%c0_23, %c0_24, %c4, %c0_25, %c0_26] : memref<1x1x12x8x128xf32, #tpu.memory_space<vmem>>, vector<1x1x1x8x128xf32>
    %50 = vector.shape_cast %49 : vector<1x1x1x8x128xf32> to vector<8x128xf32>
    %51 = arith.extui %38 : vector<8x128xi1> to vector<8x128xi32>
    %52 = arith.sitofp %51 : vector<8x128xi32> to vector<8x128xf32>
    %53 = vector.shape_cast %52 : vector<8x128xf32> to vector<1x8x128xf32>
    %cst_27 = arith.constant dense<0.000000e+00> : vector<8x128xf32>
    %54 = vector.multi_reduction <add>, %53, %cst_27 [0] : vector<1x8x128xf32> to vector<8x128xf32>
    %55 = arith.addf %50, %54 : vector<8x128xf32>
    %c0_28 = arith.constant 0 : index
    %c0_29 = arith.constant 0 : index
    %c4_30 = arith.constant 4 : index
    %c0_31 = arith.constant 0 : index
    %c0_32 = arith.constant 0 : index
    %56 = vector.load %arg5[%c0_28, %c0_29, %c4_30, %c0_31, %c0_32] : memref<1x1x12x8x128xf32, #tpu.memory_space<vmem>>, vector<1x1x1x8x128xf32>
    %57 = vector.shape_cast %56 : vector<1x1x1x8x128xf32> to vector<8x128xf32>
    %58 = vector.shape_cast %55 : vector<8x128xf32> to vector<1x1x1x8x128xf32>
    tpu.vector_store %arg5[%c0_28, %c0_29, %c4_30, %c0_31, %c0_32], %58 {strides = array<i32>} : memref<1x1x12x8x128xf32, #tpu.memory_space<vmem>>, vector<1x1x1x8x128xf32>,
    %c0_33 = arith.constant 0 : index
    %c0_34 = arith.constant 0 : index
    %c8 = arith.constant 8 : index
    %c0_35 = arith.constant 0 : index
    %c0_36 = arith.constant 0 : index
    %59 = vector.load %arg5[%c0_33, %c0_34, %c8, %c0_35, %c0_36] : memref<1x1x12x8x128xf32, #tpu.memory_space<vmem>>, vector<1x1x1x8x128xf32>
    %60 = vector.shape_cast %59 : vector<1x1x1x8x128xf32> to vector<8x128xf32>
    %61 = arith.mulf %36, %36 : vector<8x128xf32>
    %62 = vector.shape_cast %61 : vector<8x128xf32> to vector<1x8x128xf32>
    %cst_37 = arith.constant dense<0.000000e+00> : vector<8x128xf32>
    %63 = vector.multi_reduction <add>, %62, %cst_37 [0] : vector<1x8x128xf32> to vector<8x128xf32>
    %64 = arith.addf %60, %63 : vector<8x128xf32>
    %c0_38 = arith.constant 0 : index
    %c0_39 = arith.constant 0 : index
    %c8_40 = arith.constant 8 : index
    %c0_41 = arith.constant 0 : index
    %c0_42 = arith.constant 0 : index
    %65 = vector.load %arg5[%c0_38, %c0_39, %c8_40, %c0_41, %c0_42] : memref<1x1x12x8x128xf32, #tpu.memory_space<vmem>>, vector<1x1x1x8x128xf32>
    %66 = vector.shape_cast %65 : vector<1x1x1x8x128xf32> to vector<8x128xf32>
    %67 = vector.shape_cast %64 : vector<8x128xf32> to vector<1x1x1x8x128xf32>
    tpu.vector_store %arg5[%c0_38, %c0_39, %c8_40, %c0_41, %c0_42], %67 {strides = array<i32>} : memref<1x1x12x8x128xf32, #tpu.memory_space<vmem>>, vector<1x1x1x8x128xf32>,
    %68 = vector.extract_strided_slice %34 {offsets = [1, 0, 0], sizes = [1, 8, 128], strides = [1, 1, 1]} : vector<4x8x128xf32> to vector<1x8x128xf32>
    %69 = vector.shape_cast %68 : vector<1x8x128xf32> to vector<8x128xf32>
    %c1_i32_43 = arith.constant 1 : i32
    %70 = vector.broadcast %c1_i32_43 : i32 to vector<8x128xi32>
    %71 = arith.cmpi eq, %6, %70 : vector<8x128xi32>
    %c0_44 = arith.constant 0 : index
    %c0_45 = arith.constant 0 : index
    %c1 = arith.constant 1 : index
    %c0_46 = arith.constant 0 : index
    %c0_47 = arith.constant 0 : index
    %72 = vector.load %arg5[%c0_44, %c0_45, %c1, %c0_46, %c0_47] : memref<1x1x12x8x128xf32, #tpu.memory_space<vmem>>, vector<1x1x1x8x128xf32>
    %73 = vector.shape_cast %72 : vector<1x1x1x8x128xf32> to vector<8x128xf32>
    %cst_48 = arith.constant 0.000000e+00 : f32
    %74 = vector.broadcast %cst_48 : f32 to vector<8x128xf32>
    %75 = arith.select %71, %69, %74 : vector<8x128xi1>, vector<8x128xf32>
    %76 = vector.shape_cast %75 : vector<8x128xf32> to vector<1x8x128xf32>
    %cst_49 = arith.constant dense<0.000000e+00> : vector<8x128xf32>
    %77 = vector.multi_reduction <add>, %76, %cst_49 [0] : vector<1x8x128xf32> to vector<8x128xf32>
    %78 = arith.addf %73, %77 : vector<8x128xf32>
    %c0_50 = arith.constant 0 : index
    %c0_51 = arith.constant 0 : index
    %c1_52 = arith.constant 1 : index
    %c0_53 = arith.constant 0 : index
    %c0_54 = arith.constant 0 : index
    %79 = vector.load %arg5[%c0_50, %c0_51, %c1_52, %c0_53, %c0_54] : memref<1x1x12x8x128xf32, #tpu.memory_space<vmem>>, vector<1x1x1x8x128xf32>
    %80 = vector.shape_cast %79 : vector<1x1x1x8x128xf32> to vector<8x128xf32>
    %81 = vector.shape_cast %78 : vector<8x128xf32> to vector<1x1x1x8x128xf32>
    tpu.vector_store %arg5[%c0_50, %c0_51, %c1_52, %c0_53, %c0_54], %81 {strides = array<i32>} : memref<1x1x12x8x128xf32, #tpu.memory_space<vmem>>, vector<1x1x1x8x128xf32>,
    %c0_55 = arith.constant 0 : index
    %c0_56 = arith.constant 0 : index
    %c5 = arith.constant 5 : index
    %c0_57 = arith.constant 0 : index
    %c0_58 = arith.constant 0 : index
    %82 = vector.load %arg5[%c0_55, %c0_56, %c5, %c0_57, %c0_58] : memref<1x1x12x8x128xf32, #tpu.memory_space<vmem>>, vector<1x1x1x8x128xf32>
    %83 = vector.shape_cast %82 : vector<1x1x1x8x128xf32> to vector<8x128xf32>
    %84 = arith.extui %71 : vector<8x128xi1> to vector<8x128xi32>
    %85 = arith.sitofp %84 : vector<8x128xi32> to vector<8x128xf32>
    %86 = vector.shape_cast %85 : vector<8x128xf32> to vector<1x8x128xf32>
    %cst_59 = arith.constant dense<0.000000e+00> : vector<8x128xf32>
    %87 = vector.multi_reduction <add>, %86, %cst_59 [0] : vector<1x8x128xf32> to vector<8x128xf32>
    %88 = arith.addf %83, %87 : vector<8x128xf32>
    %c0_60 = arith.constant 0 : index
    %c0_61 = arith.constant 0 : index
    %c5_62 = arith.constant 5 : index
    %c0_63 = arith.constant 0 : index
    %c0_64 = arith.constant 0 : index
    %89 = vector.load %arg5[%c0_60, %c0_61, %c5_62, %c0_63, %c0_64] : memref<1x1x12x8x128xf32, #tpu.memory_space<vmem>>, vector<1x1x1x8x128xf32>
    %90 = vector.shape_cast %89 : vector<1x1x1x8x128xf32> to vector<8x128xf32>
    %91 = vector.shape_cast %88 : vector<8x128xf32> to vector<1x1x1x8x128xf32>
    tpu.vector_store %arg5[%c0_60, %c0_61, %c5_62, %c0_63, %c0_64], %91 {strides = array<i32>} : memref<1x1x12x8x128xf32, #tpu.memory_space<vmem>>, vector<1x1x1x8x128xf32>,
    %c0_65 = arith.constant 0 : index
    %c0_66 = arith.constant 0 : index
    %c9 = arith.constant 9 : index
    %c0_67 = arith.constant 0 : index
    %c0_68 = arith.constant 0 : index
    %92 = vector.load %arg5[%c0_65, %c0_66, %c9, %c0_67, %c0_68] : memref<1x1x12x8x128xf32, #tpu.memory_space<vmem>>, vector<1x1x1x8x128xf32>
    %93 = vector.shape_cast %92 : vector<1x1x1x8x128xf32> to vector<8x128xf32>
    %94 = arith.mulf %69, %69 : vector<8x128xf32>
    %95 = vector.shape_cast %94 : vector<8x128xf32> to vector<1x8x128xf32>
    %cst_69 = arith.constant dense<0.000000e+00> : vector<8x128xf32>
    %96 = vector.multi_reduction <add>, %95, %cst_69 [0] : vector<1x8x128xf32> to vector<8x128xf32>
    %97 = arith.addf %93, %96 : vector<8x128xf32>
    %c0_70 = arith.constant 0 : index
    %c0_71 = arith.constant 0 : index
    %c9_72 = arith.constant 9 : index
    %c0_73 = arith.constant 0 : index
    %c0_74 = arith.constant 0 : index
    %98 = vector.load %arg5[%c0_70, %c0_71, %c9_72, %c0_73, %c0_74] : memref<1x1x12x8x128xf32, #tpu.memory_space<vmem>>, vector<1x1x1x8x128xf32>
    %99 = vector.shape_cast %98 : vector<1x1x1x8x128xf32> to vector<8x128xf32>
    %100 = vector.shape_cast %97 : vector<8x128xf32> to vector<1x1x1x8x128xf32>
    tpu.vector_store %arg5[%c0_70, %c0_71, %c9_72, %c0_73, %c0_74], %100 {strides = array<i32>} : memref<1x1x12x8x128xf32, #tpu.memory_space<vmem>>, vector<1x1x1x8x128xf32>,
    %101 = vector.extract_strided_slice %34 {offsets = [2, 0, 0], sizes = [1, 8, 128], strides = [1, 1, 1]} : vector<4x8x128xf32> to vector<1x8x128xf32>
    %102 = vector.shape_cast %101 : vector<1x8x128xf32> to vector<8x128xf32>
    %c2_i32 = arith.constant 2 : i32
    %103 = vector.broadcast %c2_i32 : i32 to vector<8x128xi32>
    %104 = arith.cmpi eq, %6, %103 : vector<8x128xi32>
    %c0_75 = arith.constant 0 : index
    %c0_76 = arith.constant 0 : index
    %c2 = arith.constant 2 : index
    %c0_77 = arith.constant 0 : index
    %c0_78 = arith.constant 0 : index
    %105 = vector.load %arg5[%c0_75, %c0_76, %c2, %c0_77, %c0_78] : memref<1x1x12x8x128xf32, #tpu.memory_space<vmem>>, vector<1x1x1x8x128xf32>
    %106 = vector.shape_cast %105 : vector<1x1x1x8x128xf32> to vector<8x128xf32>
    %cst_79 = arith.constant 0.000000e+00 : f32
    %107 = vector.broadcast %cst_79 : f32 to vector<8x128xf32>
    %108 = arith.select %104, %102, %107 : vector<8x128xi1>, vector<8x128xf32>
    %109 = vector.shape_cast %108 : vector<8x128xf32> to vector<1x8x128xf32>
    %cst_80 = arith.constant dense<0.000000e+00> : vector<8x128xf32>
    %110 = vector.multi_reduction <add>, %109, %cst_80 [0] : vector<1x8x128xf32> to vector<8x128xf32>
    %111 = arith.addf %106, %110 : vector<8x128xf32>
    %c0_81 = arith.constant 0 : index
    %c0_82 = arith.constant 0 : index
    %c2_83 = arith.constant 2 : index
    %c0_84 = arith.constant 0 : index
    %c0_85 = arith.constant 0 : index
    %112 = vector.load %arg5[%c0_81, %c0_82, %c2_83, %c0_84, %c0_85] : memref<1x1x12x8x128xf32, #tpu.memory_space<vmem>>, vector<1x1x1x8x128xf32>
    %113 = vector.shape_cast %112 : vector<1x1x1x8x128xf32> to vector<8x128xf32>
    %114 = vector.shape_cast %111 : vector<8x128xf32> to vector<1x1x1x8x128xf32>
    tpu.vector_store %arg5[%c0_81, %c0_82, %c2_83, %c0_84, %c0_85], %114 {strides = array<i32>} : memref<1x1x12x8x128xf32, #tpu.memory_space<vmem>>, vector<1x1x1x8x128xf32>,
    %c0_86 = arith.constant 0 : index
    %c0_87 = arith.constant 0 : index
    %c6 = arith.constant 6 : index
    %c0_88 = arith.constant 0 : index
    %c0_89 = arith.constant 0 : index
    %115 = vector.load %arg5[%c0_86, %c0_87, %c6, %c0_88, %c0_89] : memref<1x1x12x8x128xf32, #tpu.memory_space<vmem>>, vector<1x1x1x8x128xf32>
    %116 = vector.shape_cast %115 : vector<1x1x1x8x128xf32> to vector<8x128xf32>
    %117 = arith.extui %104 : vector<8x128xi1> to vector<8x128xi32>
    %118 = arith.sitofp %117 : vector<8x128xi32> to vector<8x128xf32>
    %119 = vector.shape_cast %118 : vector<8x128xf32> to vector<1x8x128xf32>
    %cst_90 = arith.constant dense<0.000000e+00> : vector<8x128xf32>
    %120 = vector.multi_reduction <add>, %119, %cst_90 [0] : vector<1x8x128xf32> to vector<8x128xf32>
    %121 = arith.addf %116, %120 : vector<8x128xf32>
    %c0_91 = arith.constant 0 : index
    %c0_92 = arith.constant 0 : index
    %c6_93 = arith.constant 6 : index
    %c0_94 = arith.constant 0 : index
    %c0_95 = arith.constant 0 : index
    %122 = vector.load %arg5[%c0_91, %c0_92, %c6_93, %c0_94, %c0_95] : memref<1x1x12x8x128xf32, #tpu.memory_space<vmem>>, vector<1x1x1x8x128xf32>
    %123 = vector.shape_cast %122 : vector<1x1x1x8x128xf32> to vector<8x128xf32>
    %124 = vector.shape_cast %121 : vector<8x128xf32> to vector<1x1x1x8x128xf32>
    tpu.vector_store %arg5[%c0_91, %c0_92, %c6_93, %c0_94, %c0_95], %124 {strides = array<i32>} : memref<1x1x12x8x128xf32, #tpu.memory_space<vmem>>, vector<1x1x1x8x128xf32>,
    %c0_96 = arith.constant 0 : index
    %c0_97 = arith.constant 0 : index
    %c10 = arith.constant 10 : index
    %c0_98 = arith.constant 0 : index
    %c0_99 = arith.constant 0 : index
    %125 = vector.load %arg5[%c0_96, %c0_97, %c10, %c0_98, %c0_99] : memref<1x1x12x8x128xf32, #tpu.memory_space<vmem>>, vector<1x1x1x8x128xf32>
    %126 = vector.shape_cast %125 : vector<1x1x1x8x128xf32> to vector<8x128xf32>
    %127 = arith.mulf %102, %102 : vector<8x128xf32>
    %128 = vector.shape_cast %127 : vector<8x128xf32> to vector<1x8x128xf32>
    %cst_100 = arith.constant dense<0.000000e+00> : vector<8x128xf32>
    %129 = vector.multi_reduction <add>, %128, %cst_100 [0] : vector<1x8x128xf32> to vector<8x128xf32>
    %130 = arith.addf %126, %129 : vector<8x128xf32>
    %c0_101 = arith.constant 0 : index
    %c0_102 = arith.constant 0 : index
    %c10_103 = arith.constant 10 : index
    %c0_104 = arith.constant 0 : index
    %c0_105 = arith.constant 0 : index
    %131 = vector.load %arg5[%c0_101, %c0_102, %c10_103, %c0_104, %c0_105] : memref<1x1x12x8x128xf32, #tpu.memory_space<vmem>>, vector<1x1x1x8x128xf32>
    %132 = vector.shape_cast %131 : vector<1x1x1x8x128xf32> to vector<8x128xf32>
    %133 = vector.shape_cast %130 : vector<8x128xf32> to vector<1x1x1x8x128xf32>
    tpu.vector_store %arg5[%c0_101, %c0_102, %c10_103, %c0_104, %c0_105], %133 {strides = array<i32>} : memref<1x1x12x8x128xf32, #tpu.memory_space<vmem>>, vector<1x1x1x8x128xf32>,
    %134 = vector.extract_strided_slice %34 {offsets = [3, 0, 0], sizes = [1, 8, 128], strides = [1, 1, 1]} : vector<4x8x128xf32> to vector<1x8x128xf32>
    %135 = vector.shape_cast %134 : vector<1x8x128xf32> to vector<8x128xf32>
    %c3_i32 = arith.constant 3 : i32
    %136 = vector.broadcast %c3_i32 : i32 to vector<8x128xi32>
    %137 = arith.cmpi eq, %6, %136 : vector<8x128xi32>
    %c0_106 = arith.constant 0 : index
    %c0_107 = arith.constant 0 : index
    %c3 = arith.constant 3 : index
    %c0_108 = arith.constant 0 : index
    %c0_109 = arith.constant 0 : index
    %138 = vector.load %arg5[%c0_106, %c0_107, %c3, %c0_108, %c0_109] : memref<1x1x12x8x128xf32, #tpu.memory_space<vmem>>, vector<1x1x1x8x128xf32>
    %139 = vector.shape_cast %138 : vector<1x1x1x8x128xf32> to vector<8x128xf32>
    %cst_110 = arith.constant 0.000000e+00 : f32
    %140 = vector.broadcast %cst_110 : f32 to vector<8x128xf32>
    %141 = arith.select %137, %135, %140 : vector<8x128xi1>, vector<8x128xf32>
    %142 = vector.shape_cast %141 : vector<8x128xf32> to vector<1x8x128xf32>
    %cst_111 = arith.constant dense<0.000000e+00> : vector<8x128xf32>
    %143 = vector.multi_reduction <add>, %142, %cst_111 [0] : vector<1x8x128xf32> to vector<8x128xf32>
    %144 = arith.addf %139, %143 : vector<8x128xf32>
    %c0_112 = arith.constant 0 : index
    %c0_113 = arith.constant 0 : index
    %c3_114 = arith.constant 3 : index
    %c0_115 = arith.constant 0 : index
    %c0_116 = arith.constant 0 : index
    %145 = vector.load %arg5[%c0_112, %c0_113, %c3_114, %c0_115, %c0_116] : memref<1x1x12x8x128xf32, #tpu.memory_space<vmem>>, vector<1x1x1x8x128xf32>
    %146 = vector.shape_cast %145 : vector<1x1x1x8x128xf32> to vector<8x128xf32>
    %147 = vector.shape_cast %144 : vector<8x128xf32> to vector<1x1x1x8x128xf32>
    tpu.vector_store %arg5[%c0_112, %c0_113, %c3_114, %c0_115, %c0_116], %147 {strides = array<i32>} : memref<1x1x12x8x128xf32, #tpu.memory_space<vmem>>, vector<1x1x1x8x128xf32>,
    %c0_117 = arith.constant 0 : index
    %c0_118 = arith.constant 0 : index
    %c7 = arith.constant 7 : index
    %c0_119 = arith.constant 0 : index
    %c0_120 = arith.constant 0 : index
    %148 = vector.load %arg5[%c0_117, %c0_118, %c7, %c0_119, %c0_120] : memref<1x1x12x8x128xf32, #tpu.memory_space<vmem>>, vector<1x1x1x8x128xf32>
    %149 = vector.shape_cast %148 : vector<1x1x1x8x128xf32> to vector<8x128xf32>
    %150 = arith.extui %137 : vector<8x128xi1> to vector<8x128xi32>
    %151 = arith.sitofp %150 : vector<8x128xi32> to vector<8x128xf32>
    %152 = vector.shape_cast %151 : vector<8x128xf32> to vector<1x8x128xf32>
    %cst_121 = arith.constant dense<0.000000e+00> : vector<8x128xf32>
    %153 = vector.multi_reduction <add>, %152, %cst_121 [0] : vector<1x8x128xf32> to vector<8x128xf32>
    %154 = arith.addf %149, %153 : vector<8x128xf32>
    %c0_122 = arith.constant 0 : index
    %c0_123 = arith.constant 0 : index
    %c7_124 = arith.constant 7 : index
    %c0_125 = arith.constant 0 : index
    %c0_126 = arith.constant 0 : index
    %155 = vector.load %arg5[%c0_122, %c0_123, %c7_124, %c0_125, %c0_126] : memref<1x1x12x8x128xf32, #tpu.memory_space<vmem>>, vector<1x1x1x8x128xf32>
    %156 = vector.shape_cast %155 : vector<1x1x1x8x128xf32> to vector<8x128xf32>
    %157 = vector.shape_cast %154 : vector<8x128xf32> to vector<1x1x1x8x128xf32>
    tpu.vector_store %arg5[%c0_122, %c0_123, %c7_124, %c0_125, %c0_126], %157 {strides = array<i32>} : memref<1x1x12x8x128xf32, #tpu.memory_space<vmem>>, vector<1x1x1x8x128xf32>,
    %c0_127 = arith.constant 0 : index
    %c0_128 = arith.constant 0 : index
    %c11 = arith.constant 11 : index
    %c0_129 = arith.constant 0 : index
    %c0_130 = arith.constant 0 : index
    %158 = vector.load %arg5[%c0_127, %c0_128, %c11, %c0_129, %c0_130] : memref<1x1x12x8x128xf32, #tpu.memory_space<vmem>>, vector<1x1x1x8x128xf32>
    %159 = vector.shape_cast %158 : vector<1x1x1x8x128xf32> to vector<8x128xf32>
    %160 = arith.mulf %135, %135 : vector<8x128xf32>
    %161 = vector.shape_cast %160 : vector<8x128xf32> to vector<1x8x128xf32>
    %cst_131 = arith.constant dense<0.000000e+00> : vector<8x128xf32>
    %162 = vector.multi_reduction <add>, %161, %cst_131 [0] : vector<1x8x128xf32> to vector<8x128xf32>
    %163 = arith.addf %159, %162 : vector<8x128xf32>
    %c0_132 = arith.constant 0 : index
    %c0_133 = arith.constant 0 : index
    %c11_134 = arith.constant 11 : index
    %c0_135 = arith.constant 0 : index
    %c0_136 = arith.constant 0 : index
    %164 = vector.load %arg5[%c0_132, %c0_133, %c11_134, %c0_135, %c0_136] : memref<1x1x12x8x128xf32, #tpu.memory_space<vmem>>, vector<1x1x1x8x128xf32>
    %165 = vector.shape_cast %164 : vector<1x1x1x8x128xf32> to vector<8x128xf32>
    %166 = vector.shape_cast %163 : vector<8x128xf32> to vector<1x1x1x8x128xf32>
    tpu.vector_store %arg5[%c0_132, %c0_133, %c11_134, %c0_135, %c0_136], %166 {strides = array<i32>} : memref<1x1x12x8x128xf32, #tpu.memory_space<vmem>>, vector<1x1x1x8x128xf32>,
    return
  }
  func.func @transform_0(%arg0: i32, %arg1: i32, %arg2: i32) -> (i32, i32, i32, i32) {
    %c1_i32 = arith.constant 1 : i32
    %0 = arith.muli %arg1, %c1_i32 : i32
    %1 = arith.addi %0, %arg2 : i32
    %c0_i32 = arith.constant 0 : i32
    %c0_i32_0 = arith.constant 0 : i32
    %c0_i32_1 = arith.constant 0 : i32
    return %arg0, %c0_i32, %1, %c0_i32_0 : i32, i32, i32, i32
  }
  func.func @transform_1(%arg0: i32, %arg1: i32, %arg2: i32) -> (i32, i32, i32) {
    %c1_i32 = arith.constant 1 : i32
    %0 = arith.muli %arg1, %c1_i32 : i32
    %1 = arith.addi %0, %arg2 : i32
    %c0_i32 = arith.constant 0 : i32
    %c0_i32_0 = arith.constant 0 : i32
    return %arg0, %1, %c0_i32 : i32, i32, i32
  }
  func.func @transform_2(%arg0: i32, %arg1: i32, %arg2: i32) -> (i32, i32, i32, i32, i32) {
    %c0_i32 = arith.constant 0 : i32
    %c0_i32_0 = arith.constant 0 : i32
    %c0_i32_1 = arith.constant 0 : i32
    %c0_i32_2 = arith.constant 0 : i32
    return %arg0, %arg1, %c0_i32, %c0_i32_0, %c0_i32_1 : i32, i32, i32, i32, i32
  }
}

</mosaic_0001>

<llo_original>
// kernel: tpu_custom_call.1
$region0: #{tpu_custom_call.1}
  #allocation0 [shape = 'u32[]', space=smem, size = 0x4, offset = 0x4, fixed_abs, tag = 'smem constant byte address 0x4 - core index']
  #allocation1 [shape = 'u32[72,128]{1,0:T(1,128)}', space=vmem, size = 0x9000, scoped, tag = 'internal scratch']
  %s0 = inlined_call_operand.hbm [shape: f32[2,4,8,128], index: 0, kind: input, shape index: {}]
  %s1 = inlined_call_operand.hbm [shape: s32[2,8,128], index: 1, kind: input, shape index: {}]
  %s2 = inlined_call_operand.hbm [shape: f32[2,1,12,8,128], index: 2, kind: output, shape index: {}]
  %s3 = sld [smem:[#allocation0]]
  $region53: #{tpu_custom_call.1} parent=0
    _
  %s5 = ssub.s32 1, %s3
  %s6 = scalar_select 0, %s5, %s3
  $region1: #{tpu_custom_call.1} parent=0
    #allocation2 [shape = 'u8[32768]{0}', space=vmem, size = 0x8000, scoped, tag = 'input window, operand 0']
    #allocation3 [shape = 's32[2]{0}', space=sflag, size = 0x8, scoped, tag = 'scoped memory for tpu_custom_call.1']
    #allocation4 [shape = 's32[2]{0}', space=sflag, size = 0x8, scoped, tag = 'scoped memory for tpu_custom_call.1']
    #allocation5 [shape = 'u8[8192]{0}', space=vmem, size = 0x2000, scoped, tag = 'input window, operand 1']
    #allocation6 [shape = 's32[2]{0}', space=sflag, size = 0x8, scoped, tag = 'scoped memory for tpu_custom_call.1']
    #allocation7 [shape = 'u8[98304]{0}', space=vmem, size = 0x18000, scoped, tag = 'output window, operand 0']
    %7 = vsyncpa [#allocation3], 0
    %s8 = scalar_lea.sflag [#allocation3], 1
    %9 = vsyncpa %s8, 0
    %10 = vsyncpa [#allocation6], 0
    %s11 = scalar_lea.sflag [#allocation6], 1
    %12 = vsyncpa %s11, 0
    %13 = vsyncpa [#allocation4], 0
    %s14 = scalar_lea.sflag [#allocation4], 1
    %15 = vsyncpa %s14, 0
    loop: start=0, step=1, limit=4
    $region2: #{tpu_custom_call.1} parent=1 // loop_pre_header
      _
    $region3: #{tpu_custom_call.1} parent=1 // loop_header
      %s17 = sphi 0, %s21
      %p18 = scmp.ge.s32.totalorder %s17, 4
      %s24 = sphi 0, %s43
      %s25 = sphi 0, %s39
      %s26 = sphi 0, %s35
      %s27 = sphi 0, %s24
      %s28 = sphi 0, %s25
      %s29 = sphi 0, %s26
      %s30 = sphi 0, %s27
      %s31 = sphi 0, %s28
      %s32 = sphi 0, %s29
      %s50 = sphi 0, %s52
      %s53 = sphi 0, %s50
      %s54 = sphi 0, %s53
      %s70 = sphi 0, %s54
      %s80 = sphi 0, %s82
      %s83 = sphi 0, %s80
      %s84 = sphi 0, %s83
      %s100 = sphi 0, %s84
      %s108 = sphi 0, %s110
      %s111 = sphi 0, %s108
      %s112 = sphi 0, %s111
      %s128 = sphi 0, %s112
    $region4: #{tpu_custom_call.1} parent=1 // loop_header_branch
      %20 = sbr.rel (%p18) target = $region8
    $region5: #{tpu_custom_call.1} parent=1 // loop_body
      %s22 = ssub.s32 %s17, 1
      %s23 = ssub.s32 %s17, 2
      %s33 = sadd.s32 1, %s26
      %p34 = scmp.ge.s32.totalorder %s33, 1
      %s35 = scalar_select %p34, 0, %s33
      %s36 = sadd.s32 1, %s25
      %s37 = scalar_select %p34, %s36, %s25
      %p38 = scmp.ge.s32.totalorder %s37, 1
      %s39 = scalar_select %p38, 0, %s37
      %s40 = sadd.s32 1, %s24
      %s41 = scalar_select %p38, %s40, %s24
      %p42 = scmp.ge.s32.totalorder %s41, 2
      %s43 = scalar_select %p42, 0, %s41
      %s44 = sadd.s32 %s25, %s26
      %s45 = sadd.s32 %s39, %s35
      %s46 = ssub.s32 %s24, %s43
      %s47 = ssub.s32 %s44, %s45
      %s48 = sor.u32 %s46, %s47
      %p49 = scmp.eq.s32.totalorder %s48, 0
      %s51 = sadd.s32 %s50, 1
      %s52 = scalar_select %p49, %s50, %s51
      %p55 = pneg %p49
      %p56 = scmp.eq.s32.totalorder %s17, 1
      %p57 = por %p55, %p56
      %p58 = scmp.ne.s32.totalorder %s50, %s53
      %p59 = scmp.eq.s32.totalorder %s17, 0
      %p60 = por %p58, %p59
      %p61 = scmp.ne.s32.totalorder %s50, %s53
      %p62 = scmp.eq.s32.totalorder %s22, 1
      %p63 = por %p61, %p62
      %p64 = scmp.ne.s32.totalorder %s53, %s54
      %p65 = scmp.eq.s32.totalorder %s22, 0
      %p66 = por %p64, %p65
      %p67 = scmp.ne.s32.totalorder %s53, %s54
      %p68 = scmp.eq.s32.totalorder %s23, 1
      %p69 = por %p67, %p68
      %p71 = scmp.ne.s32.totalorder %s54, %s70
      %p72 = scmp.eq.s32.totalorder %s23, 0
      %p73 = por %p71, %p72
      %s74 = sadd.s32 %s25, %s26
      %s75 = sadd.s32 %s39, %s35
      %s76 = ssub.s32 %s24, %s43
      %s77 = ssub.s32 %s74, %s75
      %s78 = sor.u32 %s76, %s77
      %p79 = scmp.eq.s32.totalorder %s78, 0
      %s81 = sadd.s32 %s80, 1
      %s82 = scalar_select %p79, %s80, %s81
      %p85 = pneg %p79
      %p86 = scmp.eq.s32.totalorder %s17, 1
      %p87 = por %p85, %p86
      %p88 = scmp.ne.s32.totalorder %s80, %s83
      %p89 = scmp.eq.s32.totalorder %s17, 0
      %p90 = por %p88, %p89
      %p91 = scmp.ne.s32.totalorder %s80, %s83
      %p92 = scmp.eq.s32.totalorder %s22, 1
      %p93 = por %p91, %p92
      %p94 = scmp.ne.s32.totalorder %s83, %s84
      %p95 = scmp.eq.s32.totalorder %s22, 0
      %p96 = por %p94, %p95
      %p97 = scmp.ne.s32.totalorder %s83, %s84
      %p98 = scmp.eq.s32.totalorder %s23, 1
      %p99 = por %p97, %p98
      %p101 = scmp.ne.s32.totalorder %s84, %s100
      %p102 = scmp.eq.s32.totalorder %s23, 0
      %p103 = por %p101, %p102
      %s104 = ssub.s32 %s24, %s43
      %s105 = ssub.s32 %s25, %s39
      %s106 = sor.u32 %s104, %s105
      %p107 = scmp.eq.s32.totalorder %s106, 0
      %s109 = sadd.s32 %s108, 1
      %s110 = scalar_select %p107, %s108, %s109
      %p113 = pneg %p107
      %p114 = scmp.eq.s32.totalorder %s17, 1
      %p115 = por %p113, %p114
      %p116 = scmp.ne.s32.totalorder %s108, %s111
      %p117 = scmp.eq.s32.totalorder %s17, 0
      %p118 = por %p116, %p117
      %p119 = scmp.ne.s32.totalorder %s108, %s111
      %p120 = scmp.eq.s32.totalorder %s22, 1
      %p121 = por %p119, %p120
      %p122 = scmp.ne.s32.totalorder %s111, %s112
      %p123 = scmp.eq.s32.totalorder %s22, 0
      %p124 = por %p122, %p123
      %p125 = scmp.ne.s32.totalorder %s111, %s112
      %p126 = scmp.eq.s32.totalorder %s23, 1
      %p127 = por %p125, %p126
      %p129 = scmp.ne.s32.totalorder %s112, %s128
      %p130 = scmp.eq.s32.totalorder %s23, 0
      %p131 = por %p129, %p130
      %p132 = scmp.le.s32.totalorder 1, %s17
      %p133 = scmp.lt.s32.totalorder %s17, 3
      %p134 = pnand %p132, %p133
      %p135 = pneg %p134
      // Predicated region
      $region9: #{tpu_custom_call.1} parent=5 // pred_check
        _
      $region10: #{tpu_custom_call.1} parent=5 // pred_check_branch
        %137 = sbr.rel (%p134) target = $region12
      $region11: #{tpu_custom_call.1} parent=5 // pred_region
        %s138 = ssub.s32 %s17, 1
      $region12: #{tpu_custom_call.1} parent=5 // pred_fallthru
        _
      %p139 = scmp.lt.s32.totalorder %s17, 2
      // Predicated region
      $region13: #{tpu_custom_call.1} parent=5 // pred_check
        %p140 = pneg %p139
      $region14: #{tpu_custom_call.1} parent=5 // pred_check_branch
        %142 = sbr.rel (%p140) target = $region16
      $region15: #{tpu_custom_call.1} parent=5 // pred_region
        // Predicated region
        $region17: #{tpu_custom_call.1} parent=15 // pred_check
          %p143 = pneg %p60
        $region18: #{tpu_custom_call.1} parent=15 // pred_check_branch
          %145 = sbr.rel (%p143) target = $region20
        $region19: #{tpu_custom_call.1} parent=15 // pred_region
          %s146 = sand.u32 %s50, 1
          %s147 = scalar_lea.sflag [#allocation3], %s146
          %s148 = sand.u32 %s50, 1
          %s149 = smul.addr %s148, 32
          %s150 = scalar_lea.vmem [#allocation2], %s149
          %s151 = sadd.s32 %s25, %s26
          %153 = vsyncadd %s147, 0
          %s154 = smul.addr %s24, 4
          %s155 = sadd.s32 %s151, %s154
          %s156 = smul.addr %s155, 8
          %s157 = scalar_lea.hbm %s0, %s156
          %s158 = sshll.u32 %s157, 4
          %s159 = int_to_ptr.hbm [resolvable:$true] %s158
          %s160 = sshll.u32 %s150, 4
          %s161 = int_to_ptr.vmem [resolvable:$true] %s160
          %166 = dma.hbm_to_vmem [thread:$0]  %s159, 512, %s161, %s147, 128, 128, 8
        $region20: #{tpu_custom_call.1} parent=15 // pred_fallthru
          _
        // Predicated region
        $region21: #{tpu_custom_call.1} parent=15 // pred_check
          %p167 = pneg %p90
        $region22: #{tpu_custom_call.1} parent=15 // pred_check_branch
          %169 = sbr.rel (%p167) target = $region24
        $region23: #{tpu_custom_call.1} parent=15 // pred_region
          %s170 = sand.u32 %s80, 1
          %s171 = scalar_lea.sflag [#allocation6], %s170
          %s172 = sand.u32 %s80, 1
          %s173 = smul.addr %s172, 8
          %s174 = scalar_lea.vmem [#allocation5], %s173
          %s175 = sadd.s32 %s25, %s26
          %177 = vsyncadd %s171, 0
          %s178 = sadd.s32 %s175, %s24
          %s179 = smul.addr %s178, 8
          %s180 = scalar_lea.hbm %s1, %s179
          %s182 = sshll.u32 %s180, 4
          %s183 = int_to_ptr.hbm [resolvable:$true] %s182
          %s184 = sshll.u32 %s174, 4
          %s185 = int_to_ptr.vmem [resolvable:$true] %s184
          %187 = dma.hbm_to_vmem [thread:$0]  %s183, 128, %s185, %s171
        $region24: #{tpu_custom_call.1} parent=15 // pred_fallthru
          _
      $region16: #{tpu_custom_call.1} parent=5 // pred_fallthru
        _
      %p188 = scmp.le.s32.totalorder 1, %s17
      %p189 = scmp.lt.s32.totalorder %s17, 3
      %p190 = pnand %p188, %p189
      %p191 = pneg %p190
      // Predicated region
      $region25: #{tpu_custom_call.1} parent=5 // pred_check
        _
      $region26: #{tpu_custom_call.1} parent=5 // pred_check_branch
        %193 = sbr.rel (%p190) target = $region28
      $region27: #{tpu_custom_call.1} parent=5 // pred_region
        %s194 = ssub.s32 %s17, 1
        %s195 = sand.u32 %s53, 1
        %s196 = scalar_lea.sflag [#allocation3], %s195
        %s197 = sand.u32 %s53, 1
        %s198 = smul.addr %s197, 32
        %s199 = scalar_lea.vmem [#allocation2], %s198
        // Predicated region
        $region29: #{tpu_custom_call.1} parent=27 // pred_check
          %p200 = pneg %p66
        $region30: #{tpu_custom_call.1} parent=27 // pred_check_branch
          %202 = sbr.rel (%p200) target = $region32
        $region31: #{tpu_custom_call.1} parent=27 // pred_region
          %204 = dma.done %s196, 512
        $region32: #{tpu_custom_call.1} parent=27 // pred_fallthru
          _
        %s205 = sand.u32 %s83, 1
        %s206 = scalar_lea.sflag [#allocation6], %s205
        %s207 = sand.u32 %s83, 1
        %s208 = smul.addr %s207, 8
        %s209 = scalar_lea.vmem [#allocation5], %s208
        // Predicated region
        $region33: #{tpu_custom_call.1} parent=27 // pred_check
          %p210 = pneg %p96
        $region34: #{tpu_custom_call.1} parent=27 // pred_check_branch
          %212 = sbr.rel (%p210) target = $region36
        $region35: #{tpu_custom_call.1} parent=27 // pred_region
          %214 = dma.done %s206, 128
        $region36: #{tpu_custom_call.1} parent=27 // pred_fallthru
          _
        %s215 = sand.u32 %s53, 1
        %s216 = scalar_lea.sflag [#allocation3], %s215
        %s217 = sand.u32 %s53, 1
        %s218 = smul.addr %s217, 32
        %s219 = scalar_lea.vmem [#allocation2], %s218
        %p220 = pneg %p66
        %p221 = pneg %p63
        %s222 = sand.u32 %s83, 1
        %s223 = scalar_lea.sflag [#allocation6], %s222
        %s224 = sand.u32 %s83, 1
        %s225 = smul.addr %s224, 8
        %s226 = scalar_lea.vmem [#allocation5], %s225
        %p227 = pneg %p96
        %p228 = pneg %p93
        %p229 = pneg %p124
        %p230 = pneg %p121
        %s231 = sand.u32 %s111, 1
        %s232 = scalar_lea.sflag [#allocation4], %s231
        %s233 = sand.u32 %s111, 1
        %s234 = smul.addr %s233, 96
        %s235 = scalar_lea.vmem [#allocation7], %s234
        %s236 = sadd.s32 %s28, %s29
        %s237 = sadd.s32 %s28, %s29
        %p238 = scmp.eq.s32.totalorder %s29, 0
        // Predicated region
        $region37: #{tpu_custom_call.1} parent=27 // pred_check
          %p239 = pneg %p238
        $region38: #{tpu_custom_call.1} parent=27 // pred_check_branch
          %241 = sbr.rel (%p239) target = $region40
        $region39: #{tpu_custom_call.1} parent=27 // pred_region
          %242 = vst [vmem:[%s235] sm:$0xff] 0.0
          %243 = vst [vmem:[%s235 + $0x8] sm:$0xff] 0.0
          %244 = vst [vmem:[%s235 + $0x10] sm:$0xff] 0.0
          %245 = vst [vmem:[%s235 + $0x18] sm:$0xff] 0.0
          %246 = vst [vmem:[%s235 + $0x20] sm:$0xff] 0.0
          %247 = vst [vmem:[%s235 + $0x28] sm:$0xff] 0.0
          %248 = vst [vmem:[%s235 + $0x30] sm:$0xff] 0.0
          %249 = vst [vmem:[%s235 + $0x38] sm:$0xff] 0.0
          %250 = vst [vmem:[%s235 + $0x40] sm:$0xff] 0.0
          %251 = vst [vmem:[%s235 + $0x48] sm:$0xff] 0.0
          %252 = vst [vmem:[%s235 + $0x50] sm:$0xff] 0.0
          %253 = vst [vmem:[%s235 + $0x58] sm:$0xff] 0.0
        $region40: #{tpu_custom_call.1} parent=27 // pred_fallthru
          _
        %v254 = vld [vmem:[%s199] sm:$0xff]
        %v255 = vld [vmem:[%s199 + $0x8] sm:$0xff]
        %v256 = vld [vmem:[%s199 + $0x10] sm:$0xff]
        %v257 = vld [vmem:[%s199 + $0x18] sm:$0xff]
        %v258 = vld [vmem:[%s209] sm:$0xff]
        %v259 = vmax.f32 %v254, %v255
        %v260 = vmax.f32 %v256, %v257
        %v261 = vmax.f32 %v259, %v260
        %v262 = vsub.f32 %v254, %v261
        %v263 = vsub.f32 %v255, %v261
        %v264 = vsub.f32 %v256, %v261
        %v265 = vsub.f32 %v257, %v261
        %v266 = vmul.f32 %v262, 1.442695
        %v267 = vpow.pop %v266
        %v268 = vmul.f32 %v263, 1.442695
        %v269 = vpow.pop %v268
        %v270 = vmul.f32 %v264, 1.442695
        %v271 = vpow.pop %v270
        %v272 = vmul.f32 %v265, 1.442695
        %v273 = vpow.pop %v272
        %v274 = vadd.f32 %v267, %v269
        %v275 = vadd.f32 %v274, %v271
        %v276 = vadd.f32 %v275, %v273
        %v277 = vrcp.pop %v276
        %v278 = vmul.f32 %v276, %v277
        %v279 = vsub.f32 2.0, %v278
        %v280 = vmul.f32 %v277, %v279
        %s281 = sadd.s32 %s28, %s29
        %s282 = smul.u32 %s281, 8
        %v283 = vlaneseq
        %v284 = vshrl.u32 %v283, 7
        %v285 = vlaneseq
        %v286 = vand.u32 %v285, 127
        %v287 = vstv %s282
        %v288 = vadd.s32 %v287, %v284
        %v289 = vmul.u32 %v288, 128
        %v290 = vadd.s32 %v289, %v286
        %vm291 = vcmp.lt.s32.totalorder %v290, 256
        %v292 = vsel %vm291, %v280, 0.0
        %v293 = vmul.f32 %v267, %v292
        %v294 = vmul.f32 %v269, %v292
        %v295 = vmul.f32 %v271, %v292
        %v296 = vmul.f32 %v273, %v292
        %vm297 = vcmp.eq.s32.totalorder %v258, 0
        %v298 = vld [vmem:[%s235] sm:$0xff]
        %v299 = vsel %vm297, %v293, 0.0
        %v300 = vadd.f32 %v299, 0.0
        %v301 = vadd.f32 %v298, %v300
        %302 = vst [vmem:[%s235] sm:$0xff] %v301
        %s303 = scalar_lea.vmem %s235, 32 [#allocation7]
        %v304 = vld [vmem:[%s303] sm:$0xff]
        %v305 = vsel %vm297, 1, 0
        %v306 = vcvt.s32.f32 %v305
        %v307 = vadd.f32 %v306, 0.0
        %v308 = vadd.f32 %v304, %v307
        %309 = vst [vmem:[%s303] sm:$0xff] %v308
        %s310 = scalar_lea.vmem %s235, 64 [#allocation7]
        %v311 = vld [vmem:[%s310] sm:$0xff]
        %v312 = vmul.f32 %v293, %v293
        %v313 = vadd.f32 %v312, 0.0
        %v314 = vadd.f32 %v311, %v313
        %315 = vst [vmem:[%s310] sm:$0xff] %v314
        %vm316 = vcmp.eq.s32.totalorder %v258, 1
        %s317 = scalar_lea.vmem %s235, 8 [#allocation7]
        %v318 = vld [vmem:[%s317] sm:$0xff]
        %v319 = vsel %vm316, %v294, 0.0
        %v320 = vadd.f32 %v319, 0.0
        %v321 = vadd.f32 %v318, %v320
        %322 = vst [vmem:[%s317] sm:$0xff] %v321
        %s323 = scalar_lea.vmem %s235, 40 [#allocation7]
        %v324 = vld [vmem:[%s323] sm:$0xff]
        %v325 = vsel %vm316, 1, 0
        %v326 = vcvt.s32.f32 %v325
        %v327 = vadd.f32 %v326, 0.0
        %v328 = vadd.f32 %v324, %v327
        %329 = vst [vmem:[%s323] sm:$0xff] %v328
        %s330 = scalar_lea.vmem %s235, 72 [#allocation7]
        %v331 = vld [vmem:[%s330] sm:$0xff]
        %v332 = vmul.f32 %v294, %v294
        %v333 = vadd.f32 %v332, 0.0
        %v334 = vadd.f32 %v331, %v333
        %335 = vst [vmem:[%s330] sm:$0xff] %v334
        %vm336 = vcmp.eq.s32.totalorder %v258, 2
        %s337 = scalar_lea.vmem %s235, 16 [#allocation7]
        %v338 = vld [vmem:[%s337] sm:$0xff]
        %v339 = vsel %vm336, %v295, 0.0
        %v340 = vadd.f32 %v339, 0.0
        %v341 = vadd.f32 %v338, %v340
        %342 = vst [vmem:[%s337] sm:$0xff] %v341
        %s343 = scalar_lea.vmem %s235, 48 [#allocation7]
        %v344 = vld [vmem:[%s343] sm:$0xff]
        %v345 = vsel %vm336, 1, 0
        %v346 = vcvt.s32.f32 %v345
        %v347 = vadd.f32 %v346, 0.0
        %v348 = vadd.f32 %v344, %v347
        %349 = vst [vmem:[%s343] sm:$0xff] %v348
        %s350 = scalar_lea.vmem %s235, 80 [#allocation7]
        %v351 = vld [vmem:[%s350] sm:$0xff]
        %v352 = vmul.f32 %v295, %v295
        %v353 = vadd.f32 %v352, 0.0
        %v354 = vadd.f32 %v351, %v353
        %355 = vst [vmem:[%s350] sm:$0xff] %v354
        %vm356 = vcmp.eq.s32.totalorder %v258, 3
        %s357 = scalar_lea.vmem %s235, 24 [#allocation7]
        %v358 = vld [vmem:[%s357] sm:$0xff]
        %v359 = vsel %vm356, %v296, 0.0
        %v360 = vadd.f32 %v359, 0.0
        %v361 = vadd.f32 %v358, %v360
        %362 = vst [vmem:[%s357] sm:$0xff] %v361
        %s363 = scalar_lea.vmem %s235, 56 [#allocation7]
        %v364 = vld [vmem:[%s363] sm:$0xff]
        %v365 = vsel %vm356, 1, 0
        %v366 = vcvt.s32.f32 %v365
        %v367 = vadd.f32 %v366, 0.0
        %v368 = vadd.f32 %v364, %v367
        %369 = vst [vmem:[%s363] sm:$0xff] %v368
        %s370 = scalar_lea.vmem %s235, 88 [#allocation7]
        %v371 = vld [vmem:[%s370] sm:$0xff]
        %v372 = vmul.f32 %v296, %v296
        %v373 = vadd.f32 %v372, 0.0
        %v374 = vadd.f32 %v371, %v373
        %375 = vst [vmem:[%s370] sm:$0xff] %v374
        %s376 = sand.u32 %s111, 1
        %s377 = scalar_lea.sflag [#allocation4], %s376
        %s378 = sand.u32 %s111, 1
        %s379 = smul.addr %s378, 96
        %s380 = scalar_lea.vmem [#allocation7], %s379
        // Predicated region
        $region41: #{tpu_custom_call.1} parent=27 // pred_check
          %p381 = pneg %p121
        $region42: #{tpu_custom_call.1} parent=27 // pred_check_branch
          %383 = sbr.rel (%p381) target = $region44
        $region43: #{tpu_custom_call.1} parent=27 // pred_region
          %385 = vsyncadd %s377, 0
          %s386 = smul.addr %s28, 12
          %s387 = smul.addr %s27, 12
          %s388 = sadd.s32 %s386, %s387
          %s389 = smul.addr %s388, 8
          %s390 = scalar_lea.hbm %s2, %s389
          %s391 = sshll.u32 %s380, 4
          %s392 = int_to_ptr.vmem [resolvable:$true] %s391
          %s393 = sshll.u32 %s390, 4
          %s394 = int_to_ptr.hbm [resolvable:$true] %s393
          %399 = dma.vmem_to_hbm [thread:$0]  %s392, 1536, %s394, %s377, 128, 128, 8
        $region44: #{tpu_custom_call.1} parent=27 // pred_fallthru
          _
      $region28: #{tpu_custom_call.1} parent=5 // pred_fallthru
        _
      %p400 = scmp.le.s32.totalorder 2, %s17
      // Predicated region
      $region45: #{tpu_custom_call.1} parent=5 // pred_check
        %p401 = pneg %p400
      $region46: #{tpu_custom_call.1} parent=5 // pred_check_branch
        %403 = sbr.rel (%p401) target = $region48
      $region47: #{tpu_custom_call.1} parent=5 // pred_region
        %s404 = ssub.s32 %s17, 2
        // Predicated region
        $region49: #{tpu_custom_call.1} parent=47 // pred_check
          %p405 = pneg %p127
        $region50: #{tpu_custom_call.1} parent=47 // pred_check_branch
          %407 = sbr.rel (%p405) target = $region52
        $region51: #{tpu_custom_call.1} parent=47 // pred_region
          %s408 = sand.u32 %s112, 1
          %s409 = scalar_lea.sflag [#allocation4], %s408
          %s410 = sand.u32 %s112, 1
          %s411 = smul.addr %s410, 96
          %s412 = scalar_lea.vmem [#allocation7], %s411
          %414 = dma.done %s409, 1536
        $region52: #{tpu_custom_call.1} parent=47 // pred_fallthru
          _
      $region48: #{tpu_custom_call.1} parent=5 // pred_fallthru
        _
    $region6: #{tpu_custom_call.1} parent=1 // loop_footer
      %s21 = sadd.s32 1, %s17
    $region7: #{tpu_custom_call.1} parent=1 // loop_footer_branch
      %16 = sbr.rel target = $region3
    $region8: #{tpu_custom_call.1} parent=1 // loop_exit
      _
    %415 = vsyncpa [#allocation3], 1
    %s416 = scalar_lea.sflag [#allocation3], 1
    %417 = vsyncpa %s416, 1
    %418 = vsyncpa [#allocation6], 1
    %s419 = scalar_lea.sflag [#allocation6], 1
    %420 = vsyncpa %s419, 1
    %421 = vsyncpa [#allocation4], 1
    %s422 = scalar_lea.sflag [#allocation4], 1
    %423 = vsyncpa %s422, 1

</llo_original>
